<compile_context>
chip_gen: v7x
topology: tpu7x:2x2x1
jax: 0.10.0
libtpu: 0.0.40
codegen_flags: <defaults>
</compile_context>

<pallas_src>
import math

import jax
import jax.numpy as jnp
from jax.experimental import pallas as pl
from jax.experimental.pallas import tpu as pltpu


def _build_pe(d_model: int, max_len: int) -> jnp.ndarray:
    """The PyTorch pe buffer, shape (max_len, d_model), f32 (sin even / cos odd cols)."""
    position = jnp.arange(max_len, dtype=jnp.float32)[:, None]            # (max_len, 1)
    div_term = jnp.exp(
        jnp.arange(0, d_model, 2, dtype=jnp.float32) * (-math.log(10000.0) / d_model)
    )                                                                      # (d_model//2,)
    pe = jnp.zeros((max_len, d_model), dtype=jnp.float32)
    pe = pe.at[:, 0::2].set(jnp.sin(position * div_term))
    pe = pe.at[:, 1::2].set(jnp.cos(position * div_term))
    return pe                                                              # (max_len, d_model)


def _add_pe_kernel(x_ref, pe_ref, o_ref):
    # x_ref / pe_ref / o_ref all share the same (ts, lane) block shape; pe is f32.
    o_ref[...] = (x_ref[...].astype(jnp.float32) + pe_ref[...]).astype(o_ref.dtype)


def positional_encoding(x: jnp.ndarray, *, max_len: int = 5000,
                        seq_tile: int | None = None,
                        target_block_bytes: int = 2 << 20) -> jnp.ndarray:
    """x: (S, B, D). Returns x + pe[:S] (pe broadcast over batch), same dtype as x."""
    S, B, D = x.shape
    assert S <= max_len, "sequence longer than max_len"
    assert D % 2 == 0, "d_model must be even (matches the PyTorch module)"

    itemsize = jnp.dtype(x.dtype).itemsize
    pe = _build_pe(D, max_len)[:S]            # (S, D) f32 — static, like the torch buffer

    # De-dup pe across batch only when the per-batch feature width is lane-dense.
    dedup = (B > 1) and (D % 128 == 0)
    lane = D if dedup else B * D

    x2 = x.reshape(S, B * D)                  # lane-dense flatten (free, contiguous)
    pe_in = pe if (dedup or B == 1) else jnp.tile(pe, (1, B))   # (S, D) or (S, B*D)

    # --- sequence-tile sizing -------------------------------------------------
    row_bytes = lane * itemsize
    total_x_bytes = S * B * D * itemsize
    if seq_tile is None:
        rows = max(1, target_block_bytes // max(row_bytes, 1))
        ts = S if rows >= S else max(8, (int(rows) // 8) * 8)
    else:
        ts = min(int(seq_tile), S)
        if ts < S:
            ts = max(8, (ts // 8) * 8)
    if total_x_bytes > (1 << 20):
        # Keep >= 4 seq steps: megacore sharding on v7x + real DMA/compute overlap.
        ts_cap = max(8, ((pl.cdiv(S, 4) + 7) // 8) * 8)
        ts = min(ts, ts_cap)
    ts = max(1, min(ts, S))

    num_seq = pl.cdiv(S, ts)

    if dedup:
        grid = (num_seq, B)
        in_specs = [
            pl.BlockSpec((ts, D), lambda si, bi: (si, bi)),
            # Constant block index along bi -> one pe DMA per seq tile (dedup across batch).
            pl.BlockSpec((ts, D), lambda si, bi: (si, 0)),
        ]
        out_spec = pl.BlockSpec((ts, D), lambda si, bi: (si, bi))
        dims = ("parallel", "parallel")
        pe_read_bytes = S * D * 4
    else:
        grid = (num_seq,)
        in_specs = [
            pl.BlockSpec((ts, lane), lambda si: (si, 0)),
            pl.BlockSpec((ts, lane), lambda si: (si, 0)),
        ]
        out_spec = pl.BlockSpec((ts, lane), lambda si: (si, 0))
        dims = ("parallel",)
        pe_read_bytes = S * lane * 4

    # VMEM: double-buffered x-in/out blocks + double-buffered f32 pe block.
    block_lane = D if dedup else lane
    vmem_needed = 4 * ts * block_lane * itemsize + 2 * ts * block_lane * 4
    vmem_limit = None
    if vmem_needed > (12 << 20):
        vmem_limit = min(int(vmem_needed * 3 // 2), 32 << 20)   # <= 50% of v7x per-TC VMEM

    cost = pl.CostEstimate(
        flops=2 * S * B * D,
        transcendentals=0,
        bytes_accessed=2 * total_x_bytes + pe_read_bytes,
    )

    out2 = pl.pallas_call(
        _add_pe_kernel,
        out_shape=jax.ShapeDtypeStruct((S, B * D), x.dtype),
        grid_spec=pltpu.PrefetchScalarGridSpec(
            num_scalar_prefetch=0,
            grid=grid,
            in_specs=in_specs,
            out_specs=out_spec,
        ),
        compiler_params=pltpu.CompilerParams(
            dimension_semantics=dims,
            vmem_limit_bytes=vmem_limit,
        ),
        cost_estimate=cost,
    )(x2, pe_in)

    return out2.reshape(S, B, D)


if __name__ == "__main__":
    def _ref(xv, ml):
        Sr, Br, Dr = xv.shape
        return xv + _build_pe(Dr, ml)[:Sr][:, None, :]

    # 1) Small shape, single grid step, lane dim < 128 (fallback path).
    x1 = jax.random.normal(jax.random.PRNGKey(0), (8, 2, 32), dtype=jnp.float32)
    o1 = jax.block_until_ready(positional_encoding(x1, max_len=64))
    assert o1.shape == (8, 2, 32)
    assert jnp.allclose(o1, _ref(x1, 64), atol=1e-6, rtol=1e-6), "mismatch (small)"

    # 2) Multi-step pipelined grid with a partial boundary block (previously failing case).
    x2 = jax.random.normal(jax.random.PRNGKey(0), (600, 2, 64), dtype=jnp.float32)
    o2 = jax.block_until_ready(positional_encoding(x2, max_len=1024, seq_tile=128))
    assert jnp.allclose(o2, _ref(x2, 1024), atol=1e-6, rtol=1e-6), "mismatch (tiled)"

    # 3) Batch-dedup path (B > 1, D % 128 == 0): 2-D grid, pe fetched once per seq tile.
    x3 = jax.random.normal(jax.random.PRNGKey(0), (96, 2, 128), dtype=jnp.float32)
    o3 = jax.block_until_ready(positional_encoding(x3, max_len=256))
    assert jnp.allclose(o3, _ref(x3, 256), atol=1e-6, rtol=1e-6), "mismatch (dedup)"

    print("KERNEL_OK")
</pallas_src>

<mosaic_0001>
module attributes {stable_mosaic.version = 11 : i64} {
  func.func @_add_pe_kernel(%arg0: i32, %arg1: memref<8x64xf32, #tpu.memory_space<vmem>>, %arg2: memref<8x64xf32, #tpu.memory_space<vmem>>, %arg3: memref<8x64xf32, #tpu.memory_space<vmem>>) attributes {dimension_semantics = [#tpu.dimension_semantics<parallel>], iteration_bounds = array<i64: 1>, scalar_prefetch = 0 : i64, scratch_operands = 0 : i64, tpu.core_type = #tpu.core_type<tc>, window_params = [{transform_indices = @transform_0, window_bounds = array<i64: 8, 64>}, {transform_indices = @transform_1, window_bounds = array<i64: 8, 64>}, {transform_indices = @transform_2, window_bounds = array<i64: 8, 64>}]} {
    %c0 = arith.constant 0 : index
    %c0_0 = arith.constant 0 : index
    %0 = vector.load %arg1[%c0, %c0_0] : memref<8x64xf32, #tpu.memory_space<vmem>>, vector<8x64xf32>
    %c0_1 = arith.constant 0 : index
    %c0_2 = arith.constant 0 : index
    %1 = vector.load %arg2[%c0_1, %c0_2] : memref<8x64xf32, #tpu.memory_space<vmem>>, vector<8x64xf32>
    %2 = arith.addf %0, %1 : vector<8x64xf32>
    %c0_3 = arith.constant 0 : index
    %c0_4 = arith.constant 0 : index
    %3 = vector.load %arg3[%c0_3, %c0_4] : memref<8x64xf32, #tpu.memory_space<vmem>>, vector<8x64xf32>
    tpu.vector_store %arg3[%c0_3, %c0_4], %2 {strides = array<i32>} : memref<8x64xf32, #tpu.memory_space<vmem>>, vector<8x64xf32>,
    return
  }
  func.func @transform_0(%arg0: i32) -> (i32, i32) {
    %c0_i32 = arith.constant 0 : i32
    %c0_i32_0 = arith.constant 0 : i32
    return %arg0, %c0_i32 : i32, i32
  }
  func.func @transform_1(%arg0: i32) -> (i32, i32) {
    %c0_i32 = arith.constant 0 : i32
    %c0_i32_0 = arith.constant 0 : i32
    return %arg0, %c0_i32 : i32, i32
  }
  func.func @transform_2(%arg0: i32) -> (i32, i32) {
    %c0_i32 = arith.constant 0 : i32
    %c0_i32_0 = arith.constant 0 : i32
    return %arg0, %c0_i32 : i32, i32
  }
}

</mosaic_0001>

<llo_original>
// kernel: tpu_custom_call.1
$region0: #{tpu_custom_call.1}
  #allocation0 [shape = 'u32[]', space=smem, size = 0x4, offset = 0x4, fixed_abs, tag = 'smem constant byte address 0x4 - core index']
  #allocation1 [shape = 'u32[144,128]{1,0:T(1,128)}', space=vmem, size = 0x12000, scoped, tag = 'internal scratch']
  %s0 = inlined_call_operand.hbm [shape: f32[8,64], index: 0, kind: input, shape index: {}]
  %s1 = inlined_call_operand.hbm [shape: f32[8,64], index: 1, kind: input, shape index: {}]
  %s2 = inlined_call_operand.hbm [shape: f32[8,64], index: 2, kind: output, shape index: {}]
  %s3 = sld [smem:[#allocation0]]
  $region26: #{tpu_custom_call.1} parent=0
    _
  %s5 = ssub.s32 1, %s3
  %s6 = scalar_select 0, %s5, %s3
  $region1: #{tpu_custom_call.1} parent=0
    #allocation2 [shape = 'u8[4096]{0}', space=vmem, size = 0x1000, scoped, tag = 'input window, operand 0, single buffered']
    #allocation3 [shape = 's32[1]{0}', space=sflag, size = 0x4, scoped, tag = 'scoped memory for tpu_custom_call.1']
    #allocation4 [shape = 's32[1]{0}', space=sflag, size = 0x4, scoped, tag = 'scoped memory for tpu_custom_call.1']
    #allocation5 [shape = 'u8[4096]{0}', space=vmem, size = 0x1000, scoped, tag = 'input window, operand 1, single buffered']
    #allocation6 [shape = 's32[1]{0}', space=sflag, size = 0x4, scoped, tag = 'scoped memory for tpu_custom_call.1']
    #allocation7 [shape = 'u8[4096]{0}', space=vmem, size = 0x1000, scoped, tag = 'output window, operand 0, single buffered']
    %7 = vsyncpa [#allocation3], 0
    %8 = vsyncpa [#allocation6], 0
    %9 = vsyncpa [#allocation4], 0
    // Predicated region
    $region2: #{tpu_custom_call.1} parent=1 // pred_check
      _
    $region3: #{tpu_custom_call.1} parent=1 // pred_check_branch
      %11 = sbr.rel (0) target = $region5
    $region4: #{tpu_custom_call.1} parent=1 // pred_region
      %s13 = ssub.s32 128, 128
      %14 = vsyncadd [#allocation3], %s13
      %s16 = sshll.u32 [#allocation2], 4
      %s17 = int_to_ptr.vmem [resolvable:$true] %s16
      %19 = dma.hbm_to_vmem [thread:$0]  %s0, 128, %s17, [#allocation3]
    $region5: #{tpu_custom_call.1} parent=1 // pred_fallthru
      _
    // Predicated region
    $region6: #{tpu_custom_call.1} parent=1 // pred_check
      _
    $region7: #{tpu_custom_call.1} parent=1 // pred_check_branch
      %21 = sbr.rel (0) target = $region9
    $region8: #{tpu_custom_call.1} parent=1 // pred_region
      %s23 = ssub.s32 128, 128
      %24 = vsyncadd [#allocation6], %s23
      %s26 = sshll.u32 [#allocation5], 4
      %s27 = int_to_ptr.vmem [resolvable:$true] %s26
      %29 = dma.hbm_to_vmem [thread:$0]  %s1, 128, %s27, [#allocation6]
    $region9: #{tpu_custom_call.1} parent=1 // pred_fallthru
      _
    // Predicated region
    $region10: #{tpu_custom_call.1} parent=1 // pred_check
      _
    $region11: #{tpu_custom_call.1} parent=1 // pred_check_branch
      %31 = sbr.rel (0) target = $region13
    $region12: #{tpu_custom_call.1} parent=1 // pred_region
      %32 = dma.done [#allocation3], 128
    $region13: #{tpu_custom_call.1} parent=1 // pred_fallthru
      _
    // Predicated region
    $region14: #{tpu_custom_call.1} parent=1 // pred_check
      _
    $region15: #{tpu_custom_call.1} parent=1 // pred_check_branch
      %34 = sbr.rel (0) target = $region17
    $region16: #{tpu_custom_call.1} parent=1 // pred_region
      %35 = dma.done [#allocation6], 128
    $region17: #{tpu_custom_call.1} parent=1 // pred_fallthru
      _
    %v36 = vld [vmem:[#allocation2] sm:$0xff]
    %v37 = vld [vmem:[#allocation5] sm:$0xff]
    %v38 = vadd.f32 %v36, %v37
    %vm39 = vcmask 523264
    %40 = vst.msk [vmem:[#allocation7] sm:$0xff] %vm39, %v38
    // Predicated region
    $region18: #{tpu_custom_call.1} parent=1 // pred_check
      _
    $region19: #{tpu_custom_call.1} parent=1 // pred_check_branch
      %42 = sbr.rel (0) target = $region21
    $region20: #{tpu_custom_call.1} parent=1 // pred_region
      %s44 = ssub.s32 128, 128
      %45 = vsyncadd [#allocation4], %s44
      %s47 = sshll.u32 [#allocation7], 4
      %s48 = int_to_ptr.vmem [resolvable:$true] %s47
      %50 = dma.vmem_to_hbm [thread:$0]  %s48, 128, %s2, [#allocation4]
    $region21: #{tpu_custom_call.1} parent=1 // pred_fallthru
      _
    // Predicated region
    $region22: #{tpu_custom_call.1} parent=1 // pred_check
      _
    $region23: #{tpu_custom_call.1} parent=1 // pred_check_branch
      %52 = sbr.rel (0) target = $region25
    $region24: #{tpu_custom_call.1} parent=1 // pred_region
      %53 = dma.done [#allocation4], 128
    $region25: #{tpu_custom_call.1} parent=1 // pred_fallthru
      _
    %54 = vsyncpa [#allocation3], 1
    %55 = vsyncpa [#allocation6], 1
    %56 = vsyncpa [#allocation4], 1

</llo_original>
